<compile_context>
chip_gen: v7x
topology: tpu7x:2x2x1
jax: 0.10.0
libtpu: 0.0.40
codegen_flags: <defaults>
</compile_context>

<pallas_src>
import functools

import jax
import jax.numpy as jnp
from jax.experimental import pallas as pl
from jax.experimental.pallas import tpu as pltpu

_LANE = 128      # f32 lane width
_SUBLANE = 8     # f32 sublane width


def _round_up(x, m):
    return ((x + m - 1) // m) * m


# --------------------------------------------------------------------------
# Kernels
# --------------------------------------------------------------------------

def _planes_kernel(xr_ref, xi_ref, o_ref):
    # xr/xi: (bn, tc, t_hw) real / imag plane tiles.
    # o:     (bn, 2, tc, t_hw); axis 1 selects the half of the channel concat.
    o_ref[:, 0, :, :] = xr_ref[...]
    o_ref[:, 1, :, :] = xi_ref[...]


def _deint_slice_kernel(x_ref, o_ref):
    # x: (bn, tc, 2*t_hw) f32 view of the complex64 tile (re/im interleaved on
    # the lane axis).  The stride-2 compaction runs on VPU/XLU slots that are
    # idle in an HBM-bound copy, so it is free filler when Mosaic lowers it.
    x = x_ref[...]
    o_ref[:, 0, :, :] = x[:, :, 0::2]
    o_ref[:, 1, :, :] = x[:, :, 1::2]


def _deint_strided_kernel(x_ref, o_ref):
    # Same de-interleave, expressed as strided ref reads.
    t_hw = o_ref.shape[-1]
    o_ref[:, 0, :, :] = x_ref[:, :, pl.ds(0, t_hw, 2)]
    o_ref[:, 1, :, :] = x_ref[:, :, pl.ds(1, t_hw, 2)]


# --------------------------------------------------------------------------
# Tiling / VMEM budgeting
# --------------------------------------------------------------------------

@functools.lru_cache(maxsize=None)
def _vmem_budget():
    """(target_bytes per plane tile, vmem_limit_bytes), generation-aware."""
    try:
        phys = int(getattr(pltpu.get_tpu_info(), "vmem_capacity_bytes", 0)) or (64 << 20)
    except Exception:
        phys = 64 << 20  # be conservative (v7x has 64 MiB per TensorCore)
    # 2 MiB per plane tile -> ~16-20 MiB double-buffered footprint; explicit
    # limit raises v5e's 16 MiB scoped default and stays inside v7x physical.
    if phys >= (96 << 20):          # v5e / v6e: 128 MiB physical VMEM
        return 2 << 20, 48 << 20
    return 2 << 20, 32 << 20        # v7x: 64 MiB physical VMEM


def _pick_tiles(N, C, HW, itemsize, target_bytes):
    """Pick (bn, tc, t_hw): ~target_bytes per plane tile, (8,128)-legal blocks,
    lane-dense output, batch-tiled when a whole (C, HW) plane is small."""
    target_elems = max(target_bytes // itemsize, _SUBLANE * _LANE)
    c_pad = _round_up(C, _SUBLANE)
    hw_pad = _round_up(HW, _LANE)
    plane_pad = c_pad * hw_pad

    if plane_pad <= target_elems:
        # Whole (C, HW) plane fits: pack several batch images per block so the
        # fixed per-step overhead is amortized (small shearlet feature maps).
        bn = max(1, min(N, target_elems // plane_pad))
        return bn, C, HW

    if hw_pad > target_elems // _SUBLANE:
        # Even an 8-channel strip of the full row blows the budget: tile HW.
        # Size the lane tile for tc=8 so the byte target is respected.
        t_hw = max(_LANE, ((target_elems // _SUBLANE) // _LANE) * _LANE)
        return 1, min(C, _SUBLANE), min(t_hw, HW)

    # Full HW rows fit with >= 8 channels: tile channels only.
    tc_budget = max(target_elems // hw_pad, _SUBLANE)
    if C <= tc_budget:
        return 1, C, HW
    return 1, (tc_budget // _SUBLANE) * _SUBLANE, HW


# --------------------------------------------------------------------------
# Shared pallas_call builder
# --------------------------------------------------------------------------

def _concat_call(kernel, inputs, N, C, H, W, *, interleaved, block_bytes, out_dtype):
    HW = H * W
    itemsize = jnp.dtype(out_dtype).itemsize
    target_bytes, vmem_limit = _vmem_budget()
    if block_bytes is not None:
        target_bytes = int(block_bytes)

    bn, tc, t_hw = _pick_tiles(N, C, HW, itemsize, target_bytes)
    gn, gc, ghw = pl.cdiv(N, bn), pl.cdiv(C, tc), pl.cdiv(HW, t_hw)

    # Megacore (v7x): put the largest parallel extent first so the grid splits
    # evenly across the two TensorCores.  All axes are pure-copy parallel.
    ext = {"n": gn, "c": gc, "hw": ghw}
    order = sorted(ext, key=lambda k: -ext[k])
    pos = {k: i for i, k in enumerate(order)}
    pn, pc, phw = pos["n"], pos["c"], pos["hw"]

    def in_map(i, j, k):
        g = (i, j, k)
        return g[pn], g[pc], g[phw]

    def out_map(i, j, k):
        g = (i, j, k)
        return g[pn], 0, g[pc], g[phw]

    lane = 2 * t_hw if interleaved else t_hw
    in_spec = pl.BlockSpec((bn, tc, lane), in_map)
    out_spec = pl.BlockSpec((bn, 2, tc, t_hw), out_map)

    plane_bytes = N * C * HW * itemsize
    cost = pl.CostEstimate(flops=0, transcendentals=0,
                           bytes_accessed=4 * plane_bytes)  # read 2 + write 2 planes

    out = pl.pallas_call(
        kernel,
        out_shape=jax.ShapeDtypeStruct((N, 2, C, HW), out_dtype),
        grid=tuple(ext[k] for k in order),
        in_specs=[in_spec] * len(inputs),
        out_specs=out_spec,
        compiler_params=pltpu.CompilerParams(
            dimension_semantics=("parallel", "parallel", "parallel"),
            vmem_limit_bytes=vmem_limit,
        ),
        cost_estimate=cost,
    )(*inputs)

    # (N, 2, C, HW) -> (N, 2C, H, W): contiguous, layout-preserving (free).
    return out.reshape(N, 2 * C, H, W)


# --------------------------------------------------------------------------
# Two implementations + one-time probe of the single-pass fast path
# --------------------------------------------------------------------------

def _complex_concat_bitcast(x, *, mode, block_bytes=None):
    """Single HBM pass: read the complex64 buffer (as a free f32 view) once and
    write the planar output once; de-interleave happens inside the kernel."""
    N, C, H, W = x.shape
    xf = jax.lax.bitcast_convert_type(x, jnp.float32)   # (N, C, H, W, 2), free view
    xf = xf.reshape(N, C, 2 * H * W)                     # free contiguous reshape
    kernel = _deint_slice_kernel if mode == "slice" else _deint_strided_kernel
    return _concat_call(kernel, (xf,), N, C, H, W, interleaved=True,
                        block_bytes=block_bytes, out_dtype=jnp.float32)


def _complex_concat_planes(x, *, block_bytes=None):
    """Fallback: wrapper materializes real/imag planes (one extra HBM pass),
    kernel writes both halves of the channel concat in a single grid step."""
    N, C, H, W = x.shape
    xr = jnp.real(x).reshape(N, C, H * W)
    xi = jnp.imag(x).reshape(N, C, H * W)
    return _concat_call(_planes_kernel, (xr, xi), N, C, H, W, interleaved=False,
                        block_bytes=block_bytes, out_dtype=xr.dtype)


_FAST_MODE = "unprobed"


def _fast_mode():
    """Probe (once) whether Mosaic lowers the bitcast + in-kernel de-interleave.

    Returns "slice" / "strided" on success, else None (-> two-plane fallback).
    The probe uses a small ragged shape (C % 8 != 0, HW % 128 != 0) with a tiny
    block budget so partial-block masking is exercised as well, and accepts a
    mode only if the result is bit-exact vs. the XLA reference."""
    global _FAST_MODE
    if _FAST_MODE != "unprobed":
        return _FAST_MODE

    n, c, h, w = 2, 5, 12, 20
    re = jnp.arange(n * c * h * w, dtype=jnp.float32).reshape(n, c, h, w)
    im = -2.0 * re - 1.0
    xp = jax.lax.complex(re, im)
    ref = jnp.concatenate([re, im], axis=1)

    for mode in ("slice", "strided"):
        try:
            got = jax.block_until_ready(
                _complex_concat_bitcast(xp, mode=mode, block_bytes=4096))
            if got.shape == ref.shape and bool(jnp.array_equal(got, ref)):
                _FAST_MODE = mode
                return _FAST_MODE
        except Exception:
            pass
    _FAST_MODE = None
    return _FAST_MODE


def complex_concat(x, dim: int = 1, *, block_bytes=None):
    """Pallas implementation of ComplexConcat: cat((x.real, x.imag), dim=1)."""
    assert dim == 1, "kernel implemented for the default dim=1 (channel axis)"
    assert x.ndim == 4, "expected NCHW input"
    if x.dtype == jnp.complex64 and _fast_mode() is not None:
        return _complex_concat_bitcast(x, mode=_fast_mode(), block_bytes=block_bytes)
    return _complex_concat_planes(x, block_bytes=block_bytes)


# --------------------------------------------------------------------------
# Demo / correctness check
# --------------------------------------------------------------------------

if __name__ == "__main__":
    key = jax.random.PRNGKey(0)
    k_re, k_im = jax.random.split(key)
    N, C, H, W = 2, 4, 16, 16

    x_re = jax.random.normal(k_re, (N, C, H, W), dtype=jnp.float32)
    x_im = jax.random.normal(k_im, (N, C, H, W), dtype=jnp.float32)
    x = jax.lax.complex(x_re, x_im)  # complex64 NCHW input

    out = jax.jit(complex_concat)(x)
    out = jax.block_until_ready(out)

    ref = jnp.concatenate([jnp.real(x), jnp.imag(x)], axis=1)
    assert out.shape == (N, 2 * C, H, W), out.shape
    assert out.dtype == jnp.float32, out.dtype
    assert jnp.array_equal(out, ref), "mismatch vs reference concat"

    # Ragged-tile check (C % 8 != 0, HW % 128 != 0, tiny forced block budget)
    # exercising partial-block masking on whichever path was selected.
    x2_re = jax.random.normal(k_re, (2, 5, 12, 20), dtype=jnp.float32)
    x2_im = jax.random.normal(k_im, (2, 5, 12, 20), dtype=jnp.float32)
    x2 = jax.lax.complex(x2_re, x2_im)
    out2 = jax.block_until_ready(complex_concat(x2, block_bytes=4096))
    ref2 = jnp.concatenate([jnp.real(x2), jnp.imag(x2)], axis=1)
    assert jnp.array_equal(out2, ref2), "mismatch on ragged tiles"

    print("KERNEL_OK")
</pallas_src>

<mosaic_0001>
module attributes {stable_mosaic.version = 11 : i64} {
  func.func @_planes_kernel(%arg0: i32, %arg1: i32, %arg2: i32, %arg3: memref<2x4x256xf32, #tpu.memory_space<vmem>>, %arg4: memref<2x4x256xf32, #tpu.memory_space<vmem>>, %arg5: memref<2x2x4x256xf32, #tpu.memory_space<vmem>>) attributes {dimension_semantics = [#tpu.dimension_semantics<parallel>, #tpu.dimension_semantics<parallel>, #tpu.dimension_semantics<parallel>], iteration_bounds = array<i64: 1, 1, 1>, scalar_prefetch = 0 : i64, scratch_operands = 0 : i64, tpu.core_type = #tpu.core_type<tc>, window_params = [{transform_indices = @transform_0, window_bounds = array<i64: 2, 4, 256>}, {transform_indices = @transform_1, window_bounds = array<i64: 2, 4, 256>}, {transform_indices = @transform_2, window_bounds = array<i64: 2, 2, 4, 256>}]} {
    %c0 = arith.constant 0 : index
    %c0_0 = arith.constant 0 : index
    %c0_1 = arith.constant 0 : index
    %0 = vector.load %arg3[%c0, %c0_0, %c0_1] : memref<2x4x256xf32, #tpu.memory_space<vmem>>, vector<2x4x256xf32>
    %c0_2 = arith.constant 0 : index
    %c0_3 = arith.constant 0 : index
    %c0_4 = arith.constant 0 : index
    %c0_5 = arith.constant 0 : index
    %1 = vector.load %arg5[%c0_2, %c0_3, %c0_4, %c0_5] : memref<2x2x4x256xf32, #tpu.memory_space<vmem>>, vector<2x1x4x256xf32>
    %2 = vector.shape_cast %1 : vector<2x1x4x256xf32> to vector<2x4x256xf32>
    %3 = vector.shape_cast %0 : vector<2x4x256xf32> to vector<2x1x4x256xf32>
    tpu.vector_store %arg5[%c0_2, %c0_3, %c0_4, %c0_5], %3 {strides = array<i32>} : memref<2x2x4x256xf32, #tpu.memory_space<vmem>>, vector<2x1x4x256xf32>,
    %c0_6 = arith.constant 0 : index
    %c0_7 = arith.constant 0 : index
    %c0_8 = arith.constant 0 : index
    %4 = vector.load %arg4[%c0_6, %c0_7, %c0_8] : memref<2x4x256xf32, #tpu.memory_space<vmem>>, vector<2x4x256xf32>
    %c0_9 = arith.constant 0 : index
    %c1 = arith.constant 1 : index
    %c0_10 = arith.constant 0 : index
    %c0_11 = arith.constant 0 : index
    %5 = vector.load %arg5[%c0_9, %c1, %c0_10, %c0_11] : memref<2x2x4x256xf32, #tpu.memory_space<vmem>>, vector<2x1x4x256xf32>
    %6 = vector.shape_cast %5 : vector<2x1x4x256xf32> to vector<2x4x256xf32>
    %7 = vector.shape_cast %4 : vector<2x4x256xf32> to vector<2x1x4x256xf32>
    tpu.vector_store %arg5[%c0_9, %c1, %c0_10, %c0_11], %7 {strides = array<i32>} : memref<2x2x4x256xf32, #tpu.memory_space<vmem>>, vector<2x1x4x256xf32>,
    return
  }
  func.func @transform_0(%arg0: i32, %arg1: i32, %arg2: i32) -> (i32, i32, i32) {
    %c0_i32 = arith.constant 0 : i32
    return %arg0, %arg1, %arg2 : i32, i32, i32
  }
  func.func @transform_1(%arg0: i32, %arg1: i32, %arg2: i32) -> (i32, i32, i32) {
    %c0_i32 = arith.constant 0 : i32
    return %arg0, %arg1, %arg2 : i32, i32, i32
  }
  func.func @transform_2(%arg0: i32, %arg1: i32, %arg2: i32) -> (i32, i32, i32, i32) {
    %c0_i32 = arith.constant 0 : i32
    %c0_i32_0 = arith.constant 0 : i32
    return %arg0, %c0_i32, %arg1, %arg2 : i32, i32, i32, i32
  }
}

</mosaic_0001>

<llo_original>
// kernel: custom-call
$region0: #{custom-call}
  %s0 = inlined_call_operand.hbm [shape: c64[2,4,16,16], index: 0, kind: input, shape index: {}]
  %s1 = inlined_call_operand.vmem [shape: f32[2,4,16,16], index: 1, kind: output, shape index: {}]
  $region1: #{custom-call} parent=0
    #allocation0 [shape = 's32[1]{0}', space=sflag, size = 0x4, scoped, tag = 'scoped memory for custom-call']
    %2 = vsyncpa [#allocation0], 0
    %s3 = sshll.u32 %s1, 4
    %s4 = int_to_ptr.vmem [resolvable:$true] %s3
    %6 = dma.hbm_to_vmem [thread:$0]  %s0, 2048, %s4, [#allocation0]
    %7 = dma.done [#allocation0], 2048
    %8 = vsyncpa [#allocation0], 1

// kernel: custom-call.1
$region0: #{custom-call.1}
  %s0 = inlined_call_operand.hbm [shape: c64[2,4,16,16], index: 0, kind: input, shape index: {}]
  %s1 = inlined_call_operand.vmem [shape: f32[2,4,16,16], index: 1, kind: output, shape index: {}]
  %s2 = scalar_lea.hbm %s0, 2048
  $region1: #{custom-call.1} parent=0
    #allocation0 [shape = 's32[1]{0}', space=sflag, size = 0x4, scoped, tag = 'scoped memory for custom-call.1']
    %3 = vsyncpa [#allocation0], 0
    %s4 = sshll.u32 %s1, 4
    %s5 = int_to_ptr.vmem [resolvable:$true] %s4
    %7 = dma.hbm_to_vmem [thread:$0]  %s2, 2048, %s5, [#allocation0]
    %8 = dma.done [#allocation0], 2048
    %9 = vsyncpa [#allocation0], 1

// kernel: complex_concat.1
$region0: #{complex_concat.1}
  #allocation0 [shape = 'u32[]', space=smem, size = 0x4, offset = 0x4, fixed_abs, tag = 'smem constant byte address 0x4 - core index']
  #allocation1 [shape = 'u32[144,128]{1,0:T(1,128)}', space=vmem, size = 0x12000, scoped, tag = 'internal scratch']
  %s0 = inlined_call_operand.vmem [shape: f32[2,4,256], index: 0, kind: input, shape index: {}]
  %s1 = inlined_call_operand.vmem [shape: f32[2,4,256], index: 1, kind: input, shape index: {}]
  %s2 = inlined_call_operand.vmem [shape: f32[2,2,4,256], index: 2, kind: output, shape index: {}]
  %s3 = sld [smem:[#allocation0]]
  $region18: #{complex_concat.1} parent=0
    _
  %s5 = ssub.s32 1, %s3
  %s6 = scalar_select 0, %s5, %s3
  // Predicated region
  $region2: #{complex_concat.1} parent=0 // pred_check
    _
  $region3: #{complex_concat.1} parent=0 // pred_check_branch
    %8 = sbr.rel (0) target = $region5
  $region4: #{complex_concat.1} parent=0 // pred_region
    _
  $region5: #{complex_concat.1} parent=0 // pred_fallthru
    _
  // Predicated region
  $region6: #{complex_concat.1} parent=0 // pred_check
    _
  $region7: #{complex_concat.1} parent=0 // pred_check_branch
    %10 = sbr.rel (0) target = $region9
  $region8: #{complex_concat.1} parent=0 // pred_region
    _
  $region9: #{complex_concat.1} parent=0 // pred_fallthru
    _
  %v11 = vld [vmem:[%s0] sm:$0xff]
  %v12 = vld [vmem:[%s0 + $0x8] sm:$0xff]
  %13 = vst [vmem:[%s2] sm:$0xff] %v11
  %14 = vst [vmem:[%s2 + $0x10] sm:$0xff] %v12
  %v15 = vld [vmem:[%s1] sm:$0xff]
  %v16 = vld [vmem:[%s1 + $0x8] sm:$0xff]
  %s17 = scalar_lea.vmem %s2, 8
  %18 = vst [vmem:[%s17] sm:$0xff] %v15
  %19 = vst [vmem:[%s17 + $0x10] sm:$0xff] %v16
  // Predicated region
  $region10: #{complex_concat.1} parent=0 // pred_check
    _
  $region11: #{complex_concat.1} parent=0 // pred_check_branch
    %21 = sbr.rel (0) target = $region13
  $region12: #{complex_concat.1} parent=0 // pred_region
    _
  $region13: #{complex_concat.1} parent=0 // pred_fallthru
    _
  // Predicated region
  $region14: #{complex_concat.1} parent=0 // pred_check
    _
  $region15: #{complex_concat.1} parent=0 // pred_check_branch
    %23 = sbr.rel (0) target = $region17
  $region16: #{complex_concat.1} parent=0 // pred_region
    _
  $region17: #{complex_concat.1} parent=0 // pred_fallthru
    _

</llo_original>
